<compile_context>
chip_gen: v6e
topology: v6e:2x2x1
jax: 0.10.0
libtpu: 0.0.40
codegen_flags: <defaults>
</compile_context>

<pallas_src>
import functools

import jax
import jax.numpy as jnp
from jax.experimental import pallas as pl
from jax.experimental.pallas import tpu as pltpu

_TABLE_VMEM_BUDGET = 8 * 1024 * 1024    # table + softplus(table) stay well under scoped VMEM
_ONEHOT_VMEM_BUDGET = 4 * 1024 * 1024   # cap on the per-chunk one-hot temporary


def _round_up(x, m):
    return (x + m - 1) // m * m


def _hyper_kernel(sid_ref, w_ref, losses_ref, out_ref, sp_ref, acc_ref, *, batch):
    """sid_ref:    VMEM (chunk, 1) int32   sample ids for this batch chunk
    w_ref:      VMEM (D, T) f32        full embedding table, resident (constant index_map)
    losses_ref: VMEM (chunk, T)        streamed batch chunk (f32 or bf16)
    out_ref:    VMEM (1, 1) f32        scalar output (written only at finalize)
    sp_ref:     VMEM (D, T) f32        softplus(table), computed once at step 0
    acc_ref:    VMEM (chunk, T) f32    elementwise partial-sum accumulator
    """
    i = pl.program_id(0)
    chunk, _ = losses_ref.shape
    d = w_ref.shape[0]

    @pl.when(i == 0)
    def _init():
        w = w_ref[...]
        # numerically stable softplus, hoisted out of the per-chunk loop
        sp_ref[...] = jnp.maximum(w, 0.0) + jnp.log1p(jnp.exp(-jnp.abs(w)))
        acc_ref[...] = jnp.zeros_like(acc_ref)
        out_ref[...] = jnp.zeros_like(out_ref)

    # One-hot gather of this chunk's rows on the MXU (no DMAs, OOB-safe).
    ids = sid_ref[...]                                             # (chunk, 1) int32
    cols = jax.lax.broadcasted_iota(jnp.int32, (chunk, d), 1)      # (chunk, D)
    onehot = (cols == ids).astype(jnp.float32)                     # (chunk, D)
    gathered = jnp.dot(onehot, sp_ref[...],
                       preferred_element_type=jnp.float32)         # (chunk, T)

    # Explicit mask of padded batch rows (robust even if the table has NaN/inf).
    rows = i * chunk + jax.lax.broadcasted_iota(jnp.int32, (chunk, 1), 0)
    valid = rows < batch
    contrib = jnp.where(valid, gathered * losses_ref[...].astype(jnp.float32), 0.0)
    acc_ref[...] += contrib                                        # pure VPU accumulate

    @pl.when(i == pl.num_programs(0) - 1)
    def _finalize():
        # mean over batch then sum over tasks == total sum * (1 / B).
        out_ref[...] = jnp.sum(acc_ref[...], keepdims=True) * (1.0 / batch)


def naive_hyper_forward(weights, losses, sample_id, *, chunk=None):
    """weights: (data_num, task_num); losses: (B, task_num); sample_id: (B,) int."""
    weights = weights.astype(jnp.float32)
    if not jnp.issubdtype(losses.dtype, jnp.floating):
        losses = losses.astype(jnp.float32)

    d, t = weights.shape
    b, t_l = losses.shape
    assert t == t_l, (t, t_l)

    if d * t * 4 > _TABLE_VMEM_BUDGET:
        # TODO(synk): fall back to an HBM gather path (shared DMA semaphore,
        # aggregate wait, double-buffered row buffer) for very large tables.
        raise NotImplementedError("embedding table too large for VMEM-resident path")

    # Clamp ids (PyTorch Embedding would error on OOB; we clamp instead).
    sample_id = jnp.clip(sample_id.astype(jnp.int32), 0, d - 1).reshape(-1, 1)

    # Sublane-aligned batch chunk (16 for packed bf16 losses, else 8); cap so the
    # per-chunk one-hot temporary stays small, otherwise go as big as 1024.
    sublane = 16 if losses.dtype == jnp.bfloat16 else 8
    if chunk is None:
        max_chunk = max(sublane, (_ONEHOT_VMEM_BUDGET // (4 * d)) // sublane * sublane)
        chunk = min(_round_up(b, sublane), 1024, max_chunk)
    chunk = max(sublane, _round_up(chunk, sublane))

    b_pad = _round_up(b, chunk)
    if b_pad != b:
        losses = jnp.concatenate(
            [losses, jnp.zeros((b_pad - b, t), losses.dtype)], axis=0)
        sample_id = jnp.concatenate(
            [sample_id, jnp.zeros((b_pad - b, 1), jnp.int32)], axis=0)
    num_chunks = b_pad // chunk

    kernel = functools.partial(_hyper_kernel, batch=b)
    out = pl.pallas_call(
        kernel,
        out_shape=jax.ShapeDtypeStruct((1, 1), jnp.float32),
        grid_spec=pltpu.PrefetchScalarGridSpec(
            num_scalar_prefetch=0,
            grid=(num_chunks,),
            in_specs=[
                pl.BlockSpec((chunk, 1), lambda i: (i, 0)),   # sample ids (chunked)
                pl.BlockSpec((d, t), lambda i: (0, 0)),       # table: VMEM-resident, DMA'd once
                pl.BlockSpec((chunk, t), lambda i: (i, 0)),   # losses chunk (auto-pipelined)
            ],
            out_specs=pl.BlockSpec((1, 1), lambda i: (0, 0)),  # resident scalar output
            scratch_shapes=[
                pltpu.VMEM((d, t), jnp.float32),               # softplus(table), computed once
                pltpu.VMEM((chunk, t), jnp.float32),           # elementwise partial sums
            ],
        ),
        compiler_params=pltpu.CompilerParams(
            dimension_semantics=("arbitrary",)),               # reduction axis
    )(sample_id, weights, losses)
    return out[0, 0]


if __name__ == "__main__":
    data_num, task_num, batch = 16, 4, 8

    key = jax.random.PRNGKey(0)
    k_w, k_l, k_id = jax.random.split(key, 3)

    # nn.Embedding default init is N(0, 1)
    weights = jax.random.normal(k_w, (data_num, task_num), dtype=jnp.float32)
    losses = jax.random.uniform(k_l, (batch, task_num), dtype=jnp.float32)
    sample_id = jax.random.randint(k_id, (batch,), 0, data_num, dtype=jnp.int32)

    def ref_fn(w, l, sid):
        return jnp.sum(jnp.mean(jax.nn.softplus(w[sid]) * l.astype(jnp.float32), axis=0))

    out = jax.block_until_ready(naive_hyper_forward(weights, losses, sample_id))
    ref = ref_fn(weights, losses, sample_id)
    assert jnp.allclose(out, ref, atol=1e-5, rtol=1e-5), (out, ref)

    # Second case: bf16 losses pass-through, batch not a multiple of the chunk ->
    # exercises padding/masking and the multi-chunk accumulator path (grid > 1).
    batch2 = 20
    k_l2, k_id2 = jax.random.split(jax.random.PRNGKey(1))
    losses2 = jax.random.uniform(
        k_l2, (batch2, task_num), dtype=jnp.float32).astype(jnp.bfloat16)
    sample_id2 = jax.random.randint(k_id2, (batch2,), 0, data_num, dtype=jnp.int32)

    out2 = jax.block_until_ready(
        naive_hyper_forward(weights, losses2, sample_id2, chunk=16))
    ref2 = ref_fn(weights, losses2, sample_id2)
    assert jnp.allclose(out2, ref2, atol=1e-4, rtol=1e-4), (out2, ref2)

    print("KERNEL_OK")
</pallas_src>

<mosaic_0001>
module attributes {stable_mosaic.version = 11 : i64} {
  func.func @_hyper_kernel(%arg0: i32, %arg1: memref<8x1xi32, #tpu.memory_space<vmem>>, %arg2: memref<16x4xf32, #tpu.memory_space<vmem>>, %arg3: memref<8x4xf32, #tpu.memory_space<vmem>>, %arg4: memref<1x1xf32, #tpu.memory_space<vmem>>, %arg5: memref<16x4xf32, #tpu.memory_space<vmem>>, %arg6: memref<8x4xf32, #tpu.memory_space<vmem>>) attributes {dimension_semantics = [#tpu.dimension_semantics<arbitrary>], iteration_bounds = array<i64: 1>, scalar_prefetch = 0 : i64, scratch_operands = 2 : i64, tpu.core_type = #tpu.core_type<tc>, window_params = [{transform_indices = @transform_0, window_bounds = array<i64: 8, 1>}, {pipeline_mode = #tpu.pipeline_mode<synchronous>, transform_indices = @transform_1, window_bounds = array<i64: 16, 4>}, {transform_indices = @transform_2, window_bounds = array<i64: 8, 4>}, {pipeline_mode = #tpu.pipeline_mode<synchronous>, transform_indices = @transform_3, window_bounds = array<i64: 1, 1>}]} {
    %c0_i32 = arith.constant 0 : i32
    %0 = arith.cmpi eq, %arg0, %c0_i32 : i32
    %1 = arith.extui %0 : i1 to i32
    %c0_i32_0 = arith.constant 0 : i32
    %2 = arith.cmpi ne, %1, %c0_i32_0 : i32
    scf.if %2 {
      %c0_14 = arith.constant 0 : index
      %c0_15 = arith.constant 0 : index
      %29 = vector.load %arg2[%c0_14, %c0_15] : memref<16x4xf32, #tpu.memory_space<vmem>>, vector<16x4xf32>
      %cst_16 = arith.constant 0.000000e+00 : f32
      %30 = vector.broadcast %cst_16 : f32 to vector<16x4xf32>
      %31 = arith.maximumf %29, %30 : vector<16x4xf32>
      %32 = math.absf %29 : vector<16x4xf32>
      %cst_17 = arith.constant 0.000000e+00 : f32
      %33 = vector.broadcast %cst_17 : f32 to vector<16x4xf32>
      %34 = arith.subf %33, %32 : vector<16x4xf32>
      %35 = math.exp %34 : vector<16x4xf32>
      %36 = math.log1p %35 : vector<16x4xf32>
      %37 = arith.addf %31, %36 : vector<16x4xf32>
      %c0_18 = arith.constant 0 : index
      %c0_19 = arith.constant 0 : index
      %38 = vector.load %arg5[%c0_18, %c0_19] : memref<16x4xf32, #tpu.memory_space<vmem>>, vector<16x4xf32>
      tpu.vector_store %arg5[%c0_18, %c0_19], %37 {strides = array<i32>} : memref<16x4xf32, #tpu.memory_space<vmem>>, vector<16x4xf32>,
      %cst_20 = arith.constant 0.000000e+00 : f32
      %39 = vector.broadcast %cst_20 : f32 to vector<8x4xf32>
      %c0_21 = arith.constant 0 : index
      %c0_22 = arith.constant 0 : index
      %40 = vector.load %arg6[%c0_21, %c0_22] : memref<8x4xf32, #tpu.memory_space<vmem>>, vector<8x4xf32>
      tpu.vector_store %arg6[%c0_21, %c0_22], %39 {strides = array<i32>} : memref<8x4xf32, #tpu.memory_space<vmem>>, vector<8x4xf32>,
      %cst_23 = arith.constant 0.000000e+00 : f32
      %41 = vector.broadcast %cst_23 : f32 to vector<1x1xf32>
      %c0_24 = arith.constant 0 : index
      %c0_25 = arith.constant 0 : index
      %42 = vector.load %arg4[%c0_24, %c0_25] : memref<1x1xf32, #tpu.memory_space<vmem>>, vector<1x1xf32>
      tpu.vector_store %arg4[%c0_24, %c0_25], %41 {strides = array<i32>} : memref<1x1xf32, #tpu.memory_space<vmem>>, vector<1x1xf32>,
    } else {
    }
    %c0 = arith.constant 0 : index
    %c0_1 = arith.constant 0 : index
    %3 = vector.load %arg1[%c0, %c0_1] : memref<8x1xi32, #tpu.memory_space<vmem>>, vector<8x1xi32>
    %4 = tpu.iota {dimensions = array<i32: 1>} : vector<8x16xi32>
    %5 = vector.broadcast %3 : vector<8x1xi32> to vector<8x16xi32>
    %6 = arith.cmpi eq, %4, %5 : vector<8x16xi32>
    %7 = arith.extui %6 : vector<8x16xi1> to vector<8x16xi32>
    %8 = arith.sitofp %7 : vector<8x16xi32> to vector<8x16xf32>
    %c0_2 = arith.constant 0 : index
    %c0_3 = arith.constant 0 : index
    %9 = vector.load %arg5[%c0_2, %c0_3] : memref<16x4xf32, #tpu.memory_space<vmem>>, vector<16x4xf32>
    %cst = arith.constant dense<0.000000e+00> : vector<8x4xf32>
    %10 = tpu.matmul %8, %9, %cst {dimension_numbers = #tpu.dot_dimension_numbers<[1], [0], [0], [1], [0, 0, 1, 1], [], []>} : vector<8x16xf32>, vector<16x4xf32>, vector<8x4xf32> -> vector<8x4xf32>
    %c8_i32 = arith.constant 8 : i32
    %11 = arith.muli %arg0, %c8_i32 : i32
    %12 = tpu.iota {dimensions = array<i32: 0>} : vector<8x1xi32>
    %13 = vector.broadcast %11 : i32 to vector<8x1xi32>
    %14 = arith.addi %13, %12 : vector<8x1xi32>
    %c8_i32_4 = arith.constant 8 : i32
    %15 = vector.broadcast %c8_i32_4 : i32 to vector<8x1xi32>
    %16 = arith.cmpi slt, %14, %15 : vector<8x1xi32>
    %c0_5 = arith.constant 0 : index
    %c0_6 = arith.constant 0 : index
    %17 = vector.load %arg3[%c0_5, %c0_6] : memref<8x4xf32, #tpu.memory_space<vmem>>, vector<8x4xf32>
    %18 = arith.mulf %10, %17 : vector<8x4xf32>
    %cst_7 = arith.constant 0.000000e+00 : f32
    %19 = vector.shape_cast %16 : vector<8x1xi1> to vector<8x1xi1>
    %20 = vector.broadcast %19 : vector<8x1xi1> to vector<8x4xi1>
    %21 = vector.broadcast %cst_7 : f32 to vector<8x4xf32>
    %22 = arith.select %20, %18, %21 : vector<8x4xi1>, vector<8x4xf32>
    %c0_8 = arith.constant 0 : index
    %c0_9 = arith.constant 0 : index
    %23 = vector.load %arg6[%c0_8, %c0_9] : memref<8x4xf32, #tpu.memory_space<vmem>>, vector<8x4xf32>
    %24 = arith.addf %23, %22 : vector<8x4xf32>
    %c0_10 = arith.constant 0 : index
    %c0_11 = arith.constant 0 : index
    %25 = vector.load %arg6[%c0_10, %c0_11] : memref<8x4xf32, #tpu.memory_space<vmem>>, vector<8x4xf32>
    tpu.vector_store %arg6[%c0_10, %c0_11], %24 {strides = array<i32>} : memref<8x4xf32, #tpu.memory_space<vmem>>, vector<8x4xf32>,
    %c0_i32_12 = arith.constant 0 : i32
    %26 = arith.cmpi eq, %arg0, %c0_i32_12 : i32
    %27 = arith.extui %26 : i1 to i32
    %c0_i32_13 = arith.constant 0 : i32
    %28 = arith.cmpi ne, %27, %c0_i32_13 : i32
    scf.if %28 {
      %c0_14 = arith.constant 0 : index
      %c0_15 = arith.constant 0 : index
      %29 = vector.load %arg6[%c0_14, %c0_15] : memref<8x4xf32, #tpu.memory_space<vmem>>, vector<8x4xf32>
      %30 = vector.shape_cast %29 : vector<8x4xf32> to vector<1x8x4xf32>
      %cst_16 = arith.constant dense<0.000000e+00> : vector<1xf32>
      %31 = vector.multi_reduction <add>, %30, %cst_16 [1, 2] : vector<1x8x4xf32> to vector<1xf32>
      %32 = vector.shape_cast %31 : vector<1xf32> to vector<1x1x1xf32>
      %33 = vector.extract %32[0, 0, 0] : f32 from vector<1x1x1xf32>
      %34 = vector.broadcast %33 : f32 to vector<1x1xf32>
      %cst_17 = arith.constant 1.250000e-01 : f32
      %35 = vector.broadcast %cst_17 : f32 to vector<1x1xf32>
      %36 = arith.mulf %34, %35 : vector<1x1xf32>
      %c0_18 = arith.constant 0 : index
      %c0_19 = arith.constant 0 : index
      %37 = vector.load %arg4[%c0_18, %c0_19] : memref<1x1xf32, #tpu.memory_space<vmem>>, vector<1x1xf32>
      tpu.vector_store %arg4[%c0_18, %c0_19], %36 {strides = array<i32>} : memref<1x1xf32, #tpu.memory_space<vmem>>, vector<1x1xf32>,
    } else {
    }
    return
  }
  func.func @transform_0(%arg0: i32) -> (i32, i32) {
    %c0_i32 = arith.constant 0 : i32
    %c0_i32_0 = arith.constant 0 : i32
    return %arg0, %c0_i32 : i32, i32
  }
  func.func @transform_1(%arg0: i32) -> (i32, i32) {
    %c0_i32 = arith.constant 0 : i32
    %c0_i32_0 = arith.constant 0 : i32
    %c0_i32_1 = arith.constant 0 : i32
    return %c0_i32, %c0_i32_0 : i32, i32
  }
  func.func @transform_2(%arg0: i32) -> (i32, i32) {
    %c0_i32 = arith.constant 0 : i32
    %c0_i32_0 = arith.constant 0 : i32
    return %arg0, %c0_i32 : i32, i32
  }
  func.func @transform_3(%arg0: i32) -> (i32, i32) {
    %c0_i32 = arith.constant 0 : i32
    %c0_i32_0 = arith.constant 0 : i32
    %c0_i32_1 = arith.constant 0 : i32
    return %c0_i32, %c0_i32_0 : i32, i32
  }
}

</mosaic_0001>

<llo_original>
// kernel: tpu_custom_call.1
$region0: #{tpu_custom_call.1}
  #allocation0 [shape = 'u32[]', space=smem, size = 0x4, offset = 0x4, fixed_abs, tag = 'smem constant byte address 0x4 - core index']
  #allocation1 [shape = 'u32[144,128]{1,0:T(1,128)}', space=vmem, size = 0x12000, scoped, tag = 'internal scratch']
  #allocation2 [shape = 'f32[16,4]{1,0:T(8,128)}', space=vmem, size = 0x2000, scoped, tag = 'scratch operand']
  #allocation3 [shape = 'f32[8,4]{1,0:T(8,128)}', space=vmem, size = 0x1000, scoped, tag = 'scratch operand']
  %s0 = inlined_call_operand.vmem [shape: s32[8,1], index: 0, kind: input, shape index: {}]
  %s1 = inlined_call_operand.vmem [shape: f32[16,4], index: 1, kind: input, shape index: {}]
  %s2 = inlined_call_operand.vmem [shape: f32[8,4], index: 2, kind: input, shape index: {}]
  %s3 = inlined_call_operand.hbm [shape: f32[1,1], index: 3, kind: output, shape index: {}]
  %s4 = sld [smem:[#allocation0]]
  $region30: #{tpu_custom_call.1} parent=0
    _
  %s6 = ssub.s32 1, %s4
  %s7 = scalar_select 0, %s6, %s4
  $region1: #{tpu_custom_call.1} parent=0
    #allocation4 [shape = 'u8[512]{0}', space=vmem, size = 0x400, scoped, tag = 'output window, operand 0, single buffered']
    #allocation5 [shape = 's32[1]{0}', space=sflag, size = 0x4, scoped, tag = 'scoped memory for tpu_custom_call.1']
    %8 = vsyncpa [#allocation5], 0
    // Predicated region
    $region2: #{tpu_custom_call.1} parent=1 // pred_check
      _
    $region3: #{tpu_custom_call.1} parent=1 // pred_check_branch
      %10 = sbr.rel (0) target = $region5
    $region4: #{tpu_custom_call.1} parent=1 // pred_region
      _
    $region5: #{tpu_custom_call.1} parent=1 // pred_fallthru
      _
    // Predicated region
    $region6: #{tpu_custom_call.1} parent=1 // pred_check
      _
    $region7: #{tpu_custom_call.1} parent=1 // pred_check_branch
      %12 = sbr.rel (0) target = $region9
    $region8: #{tpu_custom_call.1} parent=1 // pred_region
      _
    $region9: #{tpu_custom_call.1} parent=1 // pred_fallthru
      _
    // Predicated region
    $region10: #{tpu_custom_call.1} parent=1 // pred_check
      _
    $region11: #{tpu_custom_call.1} parent=1 // pred_check_branch
      %14 = sbr.rel (0) target = $region13
    $region12: #{tpu_custom_call.1} parent=1 // pred_region
      _
    $region13: #{tpu_custom_call.1} parent=1 // pred_fallthru
      _
    %p15 = scmp.eq.s32.totalorder 0, 0
    // Predicated region
    $region14: #{tpu_custom_call.1} parent=1 // pred_check
      %p16 = pneg %p15
    $region15: #{tpu_custom_call.1} parent=1 // pred_check_branch
      %18 = sbr.rel (%p16) target = $region17
    $region16: #{tpu_custom_call.1} parent=1 // pred_region
      %v19 = vld [vmem:[%s1] sm:$0xff]
      %v20 = vld [vmem:[%s1 + $0x8] sm:$0xff]
      %v21 = vmax.f32 %v19, 0.0
      %v22 = vmax.f32 %v20, 0.0
      %v23 = vand.u32 2147483647, %v19
      %v24 = vand.u32 2147483647, %v20
      %v25 = vsub.f32 0.0, %v23
      %v26 = vsub.f32 0.0, %v24
      %v27 = vmul.f32 %v25, 1.442695
      %v28 = vpow.pop %v27
      %v29 = vmul.f32 %v26, 1.442695
      %v30 = vpow.pop %v29
      %v31 = vadd.f32 %v28, 1.0
      %v32 = vlog2.pop %v31
      %v33 = vmul.f32 %v32, 0.6931472
      %v34 = vmul.f32 -0.5, %v28
      %v35 = vadd.f32 %v34, 1.0
      %v36 = vmul.f32 %v35, %v28
      %v37 = vand.u32 2147483647, %v28
      %vm38 = vcmp.lt.f32.partialorder %v37, 0.0004427343
      %v39 = vsel %vm38, %v36, %v33
      %v40 = vadd.f32 %v30, 1.0
      %v41 = vlog2.pop %v40
      %v42 = vmul.f32 %v41, 0.6931472
      %v43 = vmul.f32 -0.5, %v30
      %v44 = vadd.f32 %v43, 1.0
      %v45 = vmul.f32 %v44, %v30
      %v46 = vand.u32 2147483647, %v30
      %vm47 = vcmp.lt.f32.partialorder %v46, 0.0004427343
      %v48 = vsel %vm47, %v45, %v42
      %v49 = vadd.f32 %v21, %v39
      %v50 = vadd.f32 %v22, %v48
      %vm51 = vcmask 31744
      %52 = vst.msk [vmem:[#allocation2] sm:$0xff] %vm51, %v49
      %53 = vst.msk [vmem:[#allocation2 + $0x8] sm:$0xff] %vm51, %v50
      %54 = vst.msk [vmem:[#allocation3] sm:$0xff] %vm51, 0.0
      %vm55 = vcmask 0
      %56 = vst.msk [vmem:[#allocation4] sm:$0x1] %vm55, 0.0
    $region17: #{tpu_custom_call.1} parent=1 // pred_fallthru
      _
    %v57 = vld [vmem:[%s0] sm:$0xff]
    %v58 = vlaneseq
    %v59 = vand.u32 %v58, 127
    %60 = vset.pattern.permute.xlu0 0
    %61 = vperm.xlu0 %60, %v57
    %v62 = vpop.permute.xlu0 %61
    %vm63 = vcmp.eq.s32.totalorder %v59, %v62
    %v64 = vsel %vm63, 1, 0
    %v65 = vcvt.s32.f32 %v64
    %v66 = vld [vmem:[#allocation2] sm:$0xff]
    %v67 = vld [vmem:[#allocation2 + $0x8] sm:$0xff]
    %vm68 = vcmask 130048
    %v70 = vsel %vm68, %v65, 0
    %72 = vmatprep.subr.mxu0 0.0
    %73 = vmatpush1.msra.mxu0 0.0
    %74 = vmatprep.subr.mxu0 0.0
    %75 = vmatpush1.msra.mxu0 0.0
    %76 = vmatprep.subr.mxu0 0.0
    %77 = vmatpush1.msra.mxu0 0.0
    %78 = vmatprep.subr.mxu0 0.0
    %79 = vmatpush1.msra.mxu0 0.0
    %80 = vmatprep.subr.mxu0 0.0
    %81 = vmatpush1.msra.mxu0 0.0
    %82 = vmatprep.subr.mxu0 0.0
    %83 = vmatpush1.msra.mxu0 0.0
    %84 = vmatprep.subr.mxu0 0.0
    %85 = vmatpush1.msra.mxu0 0.0
    %86 = vmatprep.subr.mxu0 0.0
    %87 = vmatpush1.msra.mxu0 0.0
    %88 = vmatprep.subr.mxu0 0.0
    %89 = vmatpush1.msra.mxu0 0.0
    %90 = vmatprep.subr.mxu0 0.0
    %91 = vmatpush1.msra.mxu0 0.0
    %92 = vmatprep.subr.mxu0 0.0
    %93 = vmatpush1.msra.mxu0 0.0
    %94 = vmatprep.subr.mxu0 0.0
    %95 = vmatpush1.msra.mxu0 0.0
    %96 = vmatprep.subr.mxu0 0.0
    %97 = vmatpush1.msra.mxu0 0.0
    %98 = vmatprep.subr.mxu0 0.0
    %99 = vmatpush1.msra.mxu0 0.0
    %100 = vmatprep.subr.mxu0 0.0
    %101 = vmatpush1.msra.mxu0 %v67
    %102 = vmatprep.subr.mxu0 0.0
    %103 = vmatpush1.msra.mxu0 %v66
    %104 = vmatprep.subr.mxu0 0.0
    %105 = vmatpush2.msra.mxu0 0.0
    %106 = vmatprep.subr.mxu0 0.0
    %107 = vmatpush2.msra.mxu0 0.0
    %108 = vmatprep.subr.mxu0 0.0
    %109 = vmatpush2.msra.mxu0 0.0
    %110 = vmatprep.subr.mxu0 0.0
    %111 = vmatpush2.msra.mxu0 0.0
    %112 = vmatprep.subr.mxu0 0.0
    %113 = vmatpush2.msra.mxu0 0.0
    %114 = vmatprep.subr.mxu0 0.0
    %115 = vmatpush2.msra.mxu0 0.0
    %116 = vmatprep.subr.mxu0 0.0
    %117 = vmatpush2.msra.mxu0 0.0
    %118 = vmatprep.subr.mxu0 0.0
    %119 = vmatpush2.msra.mxu0 0.0
    %120 = vmatprep.subr.mxu0 0.0
    %121 = vmatpush2.msra.mxu0 0.0
    %122 = vmatprep.subr.mxu0 0.0
    %123 = vmatpush2.msra.mxu0 0.0
    %124 = vmatprep.subr.mxu0 0.0
    %125 = vmatpush2.msra.mxu0 0.0
    %126 = vmatprep.subr.mxu0 0.0
    %127 = vmatpush2.msra.mxu0 0.0
    %128 = vmatprep.subr.mxu0 0.0
    %129 = vmatpush2.msra.mxu0 0.0
    %130 = vmatprep.subr.mxu0 0.0
    %131 = vmatpush2.msra.mxu0 0.0
    %132 = vmatprep.subr.mxu0 0.0
    %133 = vmatpush2.msra.mxu0 0.0
    %134 = vmatprep.subr.mxu0 0.0
    %135 = vmatpush2.msra.mxu0 0.0
    %136 = vmatprep.mubr.f32.mxu0 0.0
    %137 = vmatmul.mubr.f32.gmra.mxu0 %v70
    %v138 = vpop.f32.mrf.mxu0
    %v139 = vadd.f32 0.0, %v138
    %v140 = vpop.f32.mrf.mxu0
    %141 = vdwg.mxu0
    %s142 = smul.u32 0, 8
    %v143 = vlaneseq
    %v144 = vshrl.u32 %v143, 7
    %v145 = vstv %s142
    %v146 = vadd.s32 %v145, %v144
    %vm147 = vcmp.lt.s32.totalorder %v146, 8
    %v148 = vld [vmem:[%s2] sm:$0xff]
    %v149 = vmul.f32 %v139, %v148
    %v150 = vsel %vm147, 1, 0
    %vm151 = vcmp.eq.s32.totalorder %v150, 1
    %v152 = vsel %vm151, %v149, 0.0
    %v153 = vld [vmem:[#allocation3] sm:$0xff]
    %v154 = vadd.f32 %v153, %v152
    %vm155 = vcmask 31744
    %156 = vst.msk [vmem:[#allocation3] sm:$0xff] %vm155, %v154
    // Predicated region
    $region18: #{tpu_custom_call.1} parent=1 // pred_check
      %p157 = pneg %p15
    $region19: #{tpu_custom_call.1} parent=1 // pred_check_branch
      %159 = sbr.rel (%p157) target = $region21
    $region20: #{tpu_custom_call.1} parent=1 // pred_region
      %v160 = vld [vmem:[#allocation3] sm:$0xff]
      %v161 = vsel %vm155, %v160, 0.0
      %162 = vadd.xlane.f32.xlu0 %v161
      %v163 = vpop.xlane.xlu0 %162
      %v164 = vrot.slane %v163, 4
      %v165 = vadd.f32 %v163, %v164
      %v166 = vrot.slane %v165, 2
      %v167 = vadd.f32 %v165, %v166
      %v168 = vrot.slane %v167, 1
      %v169 = vadd.f32 %v167, %v168
      %s170 = vtos %v169
      %v171 = vstv %s170
      %v172 = vmul.f32 %v171, 0.125
      %vm173 = vcmask 0
      %174 = vst.msk [vmem:[#allocation4] sm:$0x1] %vm173, %v172
    $region21: #{tpu_custom_call.1} parent=1 // pred_fallthru
      _
    // Predicated region
    $region22: #{tpu_custom_call.1} parent=1 // pred_check
      _
    $region23: #{tpu_custom_call.1} parent=1 // pred_check_branch
      %176 = sbr.rel (0) target = $region25
    $region24: #{tpu_custom_call.1} parent=1 // pred_region
      %s178 = ssub.s32 16, 16
      %179 = vsyncadd [#allocation5], %s178
      %s181 = sshll.u32 [#allocation4], 4
      %s182 = int_to_ptr.vmem [resolvable:$true] %s181
      %184 = dma.vmem_to_hbm [thread:$0]  %s182, 16, %s3, [#allocation5]
    $region25: #{tpu_custom_call.1} parent=1 // pred_fallthru
      _
    // Predicated region
    $region26: #{tpu_custom_call.1} parent=1 // pred_check
      _
    $region27: #{tpu_custom_call.1} parent=1 // pred_check_branch
      %186 = sbr.rel (0) target = $region29
    $region28: #{tpu_custom_call.1} parent=1 // pred_region
      %187 = dma.done [#allocation5], 16
    $region29: #{tpu_custom_call.1} parent=1 // pred_fallthru
      _
    %188 = vsyncpa [#allocation5], 1

</llo_original>
